<compile_context>
chip_gen: v7x
topology: tpu7x:2x2x1
jax: 0.10.0
libtpu: 0.0.40
codegen_flags: <defaults>
</compile_context>

<pallas_src>
import functools
import math

import numpy as np
import jax
import jax.numpy as jnp
from jax.experimental import pallas as pl
from jax.experimental.pallas import tpu as pltpu


# ---------------------------------------------------------------------------
# Kernel bodies
# ---------------------------------------------------------------------------
def _prep_kernel(emb_ref, wlbl_ref, embn_ref, tgt_ref, ctm_ref, ftgt_ref, *,
                 cos_m, sin_m, threshold, mm):
    """Per-row work hoisted out of the class-tile loop (runs once, grid=(1,))."""
    emb = emb_ref[...].astype(jnp.float32)                        # (B, D)
    emb_n = emb * jax.lax.rsqrt(jnp.sum(emb * emb, axis=1, keepdims=True))
    embn_ref[...] = emb_n.astype(embn_ref.dtype)                  # bf16 MXU operand

    w = wlbl_ref[...].astype(jnp.float32)                         # (B, D) label cols of W
    w_n = w * jax.lax.rsqrt(jnp.sum(w * w, axis=1, keepdims=True))
    tgt = jnp.clip(jnp.sum(emb_n * w_n, axis=1, keepdims=True), -1.0, 1.0)
    tgt_ref[...] = tgt                                            # (B, 1)

    sin_theta = jnp.sqrt(jnp.maximum(1.0 - tgt * tgt, 0.0))
    ctm = tgt * cos_m - sin_theta * sin_m
    ctm_ref[...] = ctm
    ftgt_ref[...] = jnp.where(tgt > threshold, ctm, tgt - mm)


def _curricular_matmul_kernel(label_ref, t_ref, embn_ref, w_ref, ctm_ref,
                              ftgt_ref, out_ref, *, tile_c, out_scale,
                              out_bias):
    """Fused class-tile kernel: raw-bf16 MXU matmul, post-matmul (1, TC) column
    normalization, curricular reweighting, target-logit scatter, fused
    label-smoothing/scale epilogue."""
    j = pl.program_id(0)

    w = w_ref[...]                                                 # (D, TC) bf16
    # Per-column inverse L2 norm; the scale commutes through the matmul, so the
    # raw bf16 tile feeds the MXU directly (no D*TC rescale / re-cast tile).
    wf = w.astype(jnp.float32)
    inv = jax.lax.rsqrt(jnp.maximum(
        jnp.sum(wf * wf, axis=0, keepdims=True), 1e-30))           # (1, TC)

    cos = jnp.dot(embn_ref[...], w,
                  preferred_element_type=jnp.float32) * inv        # (B, TC) f32
    cos = jnp.clip(cos, -1.0, 1.0)

    t = t_ref[0, 0]                                                # SMEM scalar
    ctm = ctm_ref[...]                                             # (B, 1)
    new_cos = jnp.where(cos > ctm, cos * (t + cos), cos)

    # Scatter final_target_logit into the label column of this class tile
    # (scalar subtract on the (B,1) label instead of a (B,TC) iota add).
    lbl_local = label_ref[...] - j * tile_c                        # (B, 1) int32
    col = jax.lax.broadcasted_iota(jnp.int32, cos.shape, 1)
    new_cos = jnp.where(col == lbl_local, ftgt_ref[...], new_cos)

    # Fused epilogue: ((1-ls_eps)*x + ls_eps/C) * s  ==  x*out_scale + out_bias.
    if out_bias != 0.0:
        out = new_cos * out_scale + out_bias
    else:
        out = new_cos * out_scale
    out_ref[...] = out.astype(out_ref.dtype)


# ---------------------------------------------------------------------------
# Functional forward (jit-compiled; (kernel, t) threaded as explicit state)
# ---------------------------------------------------------------------------
def _forward_impl(kernel, t, embeddings, label, *, cos_m, sin_m, threshold, mm,
                  s, ls_eps, out_features, tile_c, c_pad, out_dtype, vmem_cap):
    B, D = embeddings.shape
    C = out_features
    TC = tile_c
    label = label.astype(jnp.int32)
    label2d = label.reshape(B, 1)

    # Tiny O(B*D) gather of the B label columns of W (fuses into the jit).
    w_lbl = jnp.take(kernel, label, axis=1).T                       # (B, D) bf16

    # --- prep kernel: per-row quantities computed once ---------------------
    emb_n, target_logit, cos_theta_m, final_tgt = pl.pallas_call(
        functools.partial(_prep_kernel, cos_m=cos_m, sin_m=sin_m,
                          threshold=threshold, mm=mm),
        out_shape=(jax.ShapeDtypeStruct((B, D), jnp.bfloat16),
                   jax.ShapeDtypeStruct((B, 1), jnp.float32),
                   jax.ShapeDtypeStruct((B, 1), jnp.float32),
                   jax.ShapeDtypeStruct((B, 1), jnp.float32)),
        grid_spec=pltpu.PrefetchScalarGridSpec(
            num_scalar_prefetch=0,
            grid=(1,),
            in_specs=[pl.BlockSpec((B, D), lambda i: (0, 0)),
                      pl.BlockSpec((B, D), lambda i: (0, 0))],
            out_specs=(pl.BlockSpec((B, D), lambda i: (0, 0)),
                       pl.BlockSpec((B, 1), lambda i: (0, 0)),
                       pl.BlockSpec((B, 1), lambda i: (0, 0)),
                       pl.BlockSpec((B, 1), lambda i: (0, 0)))),
        compiler_params=pltpu.CompilerParams(
            dimension_semantics=("arbitrary",)),
    )(embeddings.astype(jnp.float32), w_lbl)

    # Buffer EMA (torch no_grad block) — updated BEFORE use in the reweighting.
    t_new = jnp.mean(target_logit) * 0.01 + 0.99 * t

    # Pad the class dim so it divides the tile; padded columns are sliced off.
    w_full = kernel
    if c_pad != C:
        w_full = jnp.pad(kernel, ((0, 0), (0, c_pad - C)))

    out_scale = (1.0 - ls_eps) * s
    out_bias = ls_eps * s / C

    # VMEM budget: double-buffered bf16 weight tile + output tile + emb_n, the
    # lane-padded (B,1) blocks, and the in-kernel f32 intermediates.
    out_itemsize = np.dtype(out_dtype).itemsize
    Bp = ((B + 7) // 8) * 8
    est = (2 * D * TC * 2                    # (D, TC) bf16 weight tile, x2 buffers
           + 2 * Bp * TC * out_itemsize      # (B, TC) output tile, x2 buffers
           + 2 * Bp * D * 2                  # (B, D) bf16 emb_n, x2 buffers
           + 3 * 2 * Bp * 128 * 4            # three (B,1) blocks lane-pad to 128, x2
           + 6 * Bp * TC * 4                 # in-kernel f32 intermediates headroom
           + (2 << 20))                      # misc slack
    vmem_limit = int(min(max(est, 32 << 20), int(0.8 * vmem_cap)))

    # --- fused class-tile kernel -------------------------------------------
    output = pl.pallas_call(
        functools.partial(_curricular_matmul_kernel, tile_c=TC,
                          out_scale=out_scale, out_bias=out_bias),
        out_shape=jax.ShapeDtypeStruct((B, c_pad), out_dtype),
        grid_spec=pltpu.PrefetchScalarGridSpec(
            num_scalar_prefetch=0,
            grid=(c_pad // TC,),
            in_specs=[pl.BlockSpec((B, 1), lambda j: (0, 0)),
                      pl.BlockSpec(memory_space=pltpu.MemorySpace.SMEM),
                      pl.BlockSpec((B, D), lambda j: (0, 0)),
                      pl.BlockSpec((D, TC), lambda j: (0, j)),
                      pl.BlockSpec((B, 1), lambda j: (0, 0)),
                      pl.BlockSpec((B, 1), lambda j: (0, 0))],
            out_specs=pl.BlockSpec((B, TC), lambda j: (0, j))),
        compiler_params=pltpu.CompilerParams(
            dimension_semantics=("parallel",),
            vmem_limit_bytes=vmem_limit),
    )(label2d, t_new.reshape(1, 1).astype(jnp.float32), emb_n, w_full,
      cos_theta_m, final_tgt)

    if c_pad != C:
        output = output[:, :C]
    return output, t_new


# ---------------------------------------------------------------------------
# Module wrapper
# ---------------------------------------------------------------------------
class CurricularFacePallas:
    def __init__(self, in_features, out_features, ls_eps=0.0, m=0.5, s=64.0,
                 tile_c=1024, out_dtype=jnp.float32, seed=42):
        self.in_features = in_features
        self.out_features = out_features
        self.ls_eps = float(ls_eps)
        self.m = m
        self.s = float(s)
        self.cos_m = math.cos(m)
        self.sin_m = math.sin(m)
        self.threshold = math.cos(math.pi - m)
        self.mm = math.sin(math.pi - m) * m

        # --- class-tile selection -------------------------------------------
        C = out_features
        TC = min(int(tile_c), C)
        if TC < C:
            TC = max(128, (TC // 128) * 128)   # lane-aligned tiles when splitting
        elif C >= 256 and C % 256 == 0:
            TC = C // 2                        # >=2 tiles so both v7x TCs get work
        self.tile_c = TC
        self.c_pad = ((C + TC - 1) // TC) * TC

        # --- generation-aware VMEM capacity ----------------------------------
        try:
            info = pltpu.get_tpu_info()
            vmem_cap = int(getattr(info, "vmem_capacity_bytes",
                                   64 * 1024 * 1024))
        except Exception:
            vmem_cap = 64 * 1024 * 1024        # conservative (v7x per-TC)

        # deterministic init: kernel ~ N(0, 0.01^2), stored bf16; buffer t = 0
        key = jax.random.PRNGKey(seed)
        self.kernel = (0.01 * jax.random.normal(
            key, (in_features, out_features), dtype=jnp.float32)
                       ).astype(jnp.bfloat16)
        self.t = jnp.zeros((), dtype=jnp.float32)

        # jit the functional forward with config baked in as Python constants.
        self._forward = jax.jit(functools.partial(
            _forward_impl, cos_m=self.cos_m, sin_m=self.sin_m,
            threshold=self.threshold, mm=self.mm, s=self.s, ls_eps=self.ls_eps,
            out_features=C, tile_c=self.tile_c, c_pad=self.c_pad,
            out_dtype=out_dtype, vmem_cap=vmem_cap))

    def __call__(self, embeddings, label):
        output, t_new = self._forward(self.kernel, self.t, embeddings, label)
        self.t = t_new   # concrete array (outside jit) -> no tracer leak
        return output


# ---------------------------------------------------------------------------
# Pure-JAX reference mirroring kernel numerics (bf16 MXU, post-matmul norm)
# ---------------------------------------------------------------------------
def _reference(emb, w_bf16, label, t, *, cos_m, sin_m, threshold, mm, s, ls_eps):
    emb = emb.astype(jnp.float32)
    emb_n = emb * jax.lax.rsqrt(jnp.sum(emb * emb, axis=1, keepdims=True))

    w_lbl = jnp.take(w_bf16, label, axis=1).T.astype(jnp.float32)   # (B, D)
    w_lbl_n = w_lbl * jax.lax.rsqrt(jnp.sum(w_lbl * w_lbl, axis=1, keepdims=True))
    tgt = jnp.clip(jnp.sum(emb_n * w_lbl_n, axis=1, keepdims=True), -1.0, 1.0)
    sin_theta = jnp.sqrt(jnp.maximum(1.0 - tgt * tgt, 0.0))
    cos_theta_m = tgt * cos_m - sin_theta * sin_m
    final_tgt = jnp.where(tgt > threshold, cos_theta_m, tgt - mm)
    t_new = jnp.mean(tgt) * 0.01 + 0.99 * t

    wf = w_bf16.astype(jnp.float32)
    inv = jax.lax.rsqrt(jnp.maximum(jnp.sum(wf * wf, axis=0, keepdims=True),
                                    1e-30))
    cos = jnp.dot(emb_n.astype(jnp.bfloat16), w_bf16,
                  preferred_element_type=jnp.float32) * inv
    cos = jnp.clip(cos, -1.0, 1.0)

    out = jnp.where(cos > cos_theta_m, cos * (t_new + cos), cos)
    B = emb.shape[0]
    out = out.at[jnp.arange(B), label].set(final_tgt[:, 0])
    out = out * ((1.0 - ls_eps) * s) + (ls_eps * s / w_bf16.shape[1])
    return out, t_new


if __name__ == "__main__":
    B, D, C = 8, 64, 512            # batch, in_features, out_features (classes)
    key = jax.random.PRNGKey(0)
    k_emb, k_lbl = jax.random.split(key)
    embeddings = jax.random.normal(k_emb, (B, D), dtype=jnp.float32)
    label = jax.random.randint(k_lbl, (B,), 0, C, dtype=jnp.int32)

    module = CurricularFacePallas(in_features=D, out_features=C,
                                  ls_eps=0.0, m=0.5, s=64.0, tile_c=256)
    out = module(embeddings, label)
    out = jax.block_until_ready(out)

    ref_out, ref_t = _reference(
        embeddings, module.kernel, label, jnp.zeros((), jnp.float32),
        cos_m=module.cos_m, sin_m=module.sin_m, threshold=module.threshold,
        mm=module.mm, s=module.s, ls_eps=module.ls_eps)

    assert out.shape == (B, C)
    out_f32 = out.astype(jnp.float32)
    max_err = float(jnp.max(jnp.abs(out_f32 - ref_out)))
    assert jnp.allclose(out_f32, ref_out, atol=1e-1, rtol=1e-3), max_err
    assert jnp.allclose(module.t, ref_t, atol=1e-5)
    print("KERNEL_OK")
</pallas_src>

<mosaic_0001>
module attributes {stable_mosaic.version = 11 : i64} {
  func.func @_curricular_matmul_kernel(%arg0: i32, %arg1: memref<8x1xi32, #tpu.memory_space<vmem>>, %arg2: memref<1x1xf32, #tpu.memory_space<smem>>, %arg3: memref<8x64xbf16, #tpu.memory_space<vmem>>, %arg4: memref<64x256xbf16, #tpu.memory_space<vmem>>, %arg5: memref<8x1xf32, #tpu.memory_space<vmem>>, %arg6: memref<8x1xf32, #tpu.memory_space<vmem>>, %arg7: memref<8x256xf32, #tpu.memory_space<vmem>>) attributes {dimension_semantics = [#tpu.dimension_semantics<parallel>], iteration_bounds = array<i64: 2>, scalar_prefetch = 0 : i64, scratch_operands = 0 : i64, tpu.core_type = #tpu.core_type<tc>, window_params = [{pipeline_mode = #tpu.pipeline_mode<synchronous>, transform_indices = @transform_0, window_bounds = array<i64: 8, 1>}, {transform_indices = @transform_1, window_bounds = array<i64: 1, 1>}, {pipeline_mode = #tpu.pipeline_mode<synchronous>, transform_indices = @transform_2, window_bounds = array<i64: 8, 64>}, {transform_indices = @transform_3, window_bounds = array<i64: 64, 256>}, {pipeline_mode = #tpu.pipeline_mode<synchronous>, transform_indices = @transform_4, window_bounds = array<i64: 8, 1>}, {pipeline_mode = #tpu.pipeline_mode<synchronous>, transform_indices = @transform_5, window_bounds = array<i64: 8, 1>}, {transform_indices = @transform_6, window_bounds = array<i64: 8, 256>}]} {
    %c0 = arith.constant 0 : index
    %c0_0 = arith.constant 0 : index
    %0 = vector.load %arg4[%c0, %c0_0] : memref<64x256xbf16, #tpu.memory_space<vmem>>, vector<64x256xbf16>
    %1 = arith.extf %0 : vector<64x256xbf16> to vector<64x256xf32>
    %2 = arith.mulf %1, %1 : vector<64x256xf32>
    %cst = arith.constant dense<0.000000e+00> : vector<256xf32>
    %3 = vector.multi_reduction <add>, %2, %cst [0] : vector<64x256xf32> to vector<256xf32>
    %4 = vector.shape_cast %3 : vector<256xf32> to vector<1x256xf32>
    %cst_1 = arith.constant 1.000000e-30 : f32
    %5 = vector.broadcast %cst_1 : f32 to vector<1x256xf32>
    %6 = arith.maximumf %4, %5 : vector<1x256xf32>
    %7 = math.rsqrt %6 : vector<1x256xf32>
    %c0_2 = arith.constant 0 : index
    %c0_3 = arith.constant 0 : index
    %8 = vector.load %arg3[%c0_2, %c0_3] : memref<8x64xbf16, #tpu.memory_space<vmem>>, vector<8x64xbf16>
    %cst_4 = arith.constant dense<0.000000e+00> : vector<8x256xf32>
    %9 = tpu.matmul %8, %0, %cst_4 {dimension_numbers = #tpu.dot_dimension_numbers<[1], [0], [0], [1], [0, 0, 1, 1], [], []>} : vector<8x64xbf16>, vector<64x256xbf16>, vector<8x256xf32> -> vector<8x256xf32>
    %10 = vector.broadcast %7 : vector<1x256xf32> to vector<8x256xf32>
    %11 = arith.mulf %9, %10 : vector<8x256xf32>
    %cst_5 = arith.constant -1.000000e+00 : f32
    %cst_6 = arith.constant 1.000000e+00 : f32
    %12 = vector.broadcast %cst_5 : f32 to vector<8x256xf32>
    %13 = arith.maximumf %12, %11 : vector<8x256xf32>
    %14 = vector.broadcast %cst_6 : f32 to vector<8x256xf32>
    %15 = arith.minimumf %14, %13 : vector<8x256xf32>
    %c0_7 = arith.constant 0 : index
    %c0_8 = arith.constant 0 : index
    %16 = memref.load %arg2[%c0_7, %c0_8] : memref<1x1xf32, #tpu.memory_space<smem>>
    %c0_9 = arith.constant 0 : index
    %c0_10 = arith.constant 0 : index
    %17 = vector.load %arg5[%c0_9, %c0_10] : memref<8x1xf32, #tpu.memory_space<vmem>>, vector<8x1xf32>
    %18 = vector.broadcast %17 : vector<8x1xf32> to vector<8x256xf32>
    %19 = arith.cmpf ogt, %15, %18 : vector<8x256xf32>
    %20 = vector.broadcast %16 : f32 to vector<8x256xf32>
    %21 = arith.addf %20, %15 : vector<8x256xf32>
    %22 = arith.mulf %15, %21 : vector<8x256xf32>
    %23 = arith.select %19, %22, %15 : vector<8x256xi1>, vector<8x256xf32>
    %c0_11 = arith.constant 0 : index
    %c0_12 = arith.constant 0 : index
    %24 = vector.load %arg1[%c0_11, %c0_12] : memref<8x1xi32, #tpu.memory_space<vmem>>, vector<8x1xi32>
    %c256_i32 = arith.constant 256 : i32
    %25 = arith.muli %arg0, %c256_i32 : i32
    %26 = vector.broadcast %25 : i32 to vector<8x1xi32>
    %27 = arith.subi %24, %26 : vector<8x1xi32>
    %28 = tpu.iota {dimensions = array<i32: 1>} : vector<8x256xi32>
    %29 = vector.broadcast %27 : vector<8x1xi32> to vector<8x256xi32>
    %30 = arith.cmpi eq, %28, %29 : vector<8x256xi32>
    %c0_13 = arith.constant 0 : index
    %c0_14 = arith.constant 0 : index
    %31 = vector.load %arg6[%c0_13, %c0_14] : memref<8x1xf32, #tpu.memory_space<vmem>>, vector<8x1xf32>
    %32 = vector.shape_cast %31 : vector<8x1xf32> to vector<8x1xf32>
    %33 = vector.broadcast %32 : vector<8x1xf32> to vector<8x256xf32>
    %34 = arith.select %30, %33, %23 : vector<8x256xi1>, vector<8x256xf32>
    %cst_15 = arith.constant 6.400000e+01 : f32
    %35 = vector.broadcast %cst_15 : f32 to vector<8x256xf32>
    %36 = arith.mulf %34, %35 : vector<8x256xf32>
    %c0_16 = arith.constant 0 : index
    %c0_17 = arith.constant 0 : index
    %37 = vector.load %arg7[%c0_16, %c0_17] : memref<8x256xf32, #tpu.memory_space<vmem>>, vector<8x256xf32>
    tpu.vector_store %arg7[%c0_16, %c0_17], %36 {strides = array<i32>} : memref<8x256xf32, #tpu.memory_space<vmem>>, vector<8x256xf32>,
    return
  }
  func.func @transform_0(%arg0: i32) -> (i32, i32) {
    %c0_i32 = arith.constant 0 : i32
    %c0_i32_0 = arith.constant 0 : i32
    %c0_i32_1 = arith.constant 0 : i32
    return %c0_i32, %c0_i32_0 : i32, i32
  }
  func.func @transform_1(%arg0: i32) -> (i32, i32) {
    %c0_i32 = arith.constant 0 : i32
    %c0_i32_0 = arith.constant 0 : i32
    %c0_i32_1 = arith.constant 0 : i32
    return %c0_i32, %c0_i32_0 : i32, i32
  }
  func.func @transform_2(%arg0: i32) -> (i32, i32) {
    %c0_i32 = arith.constant 0 : i32
    %c0_i32_0 = arith.constant 0 : i32
    %c0_i32_1 = arith.constant 0 : i32
    return %c0_i32, %c0_i32_0 : i32, i32
  }
  func.func @transform_3(%arg0: i32) -> (i32, i32) {
    %c0_i32 = arith.constant 0 : i32
    %c0_i32_0 = arith.constant 0 : i32
    return %c0_i32, %arg0 : i32, i32
  }
  func.func @transform_4(%arg0: i32) -> (i32, i32) {
    %c0_i32 = arith.constant 0 : i32
    %c0_i32_0 = arith.constant 0 : i32
    %c0_i32_1 = arith.constant 0 : i32
    return %c0_i32, %c0_i32_0 : i32, i32
  }
  func.func @transform_5(%arg0: i32) -> (i32, i32) {
    %c0_i32 = arith.constant 0 : i32
    %c0_i32_0 = arith.constant 0 : i32
    %c0_i32_1 = arith.constant 0 : i32
    return %c0_i32, %c0_i32_0 : i32, i32
  }
  func.func @transform_6(%arg0: i32) -> (i32, i32) {
    %c0_i32 = arith.constant 0 : i32
    %c0_i32_0 = arith.constant 0 : i32
    return %c0_i32, %arg0 : i32, i32
  }
}

module attributes {stable_mosaic.version = 11 : i64} {
  func.func @_prep_kernel(%arg0: i32, %arg1: memref<8x64xf32, #tpu.memory_space<vmem>>, %arg2: memref<8x64xbf16, #tpu.memory_space<vmem>>, %arg3: memref<8x64xbf16, #tpu.memory_space<vmem>>, %arg4: memref<8x1xf32, #tpu.memory_space<vmem>>, %arg5: memref<8x1xf32, #tpu.memory_space<vmem>>, %arg6: memref<8x1xf32, #tpu.memory_space<vmem>>) attributes {dimension_semantics = [#tpu.dimension_semantics<arbitrary>], iteration_bounds = array<i64: 1>, scalar_prefetch = 0 : i64, scratch_operands = 0 : i64, tpu.core_type = #tpu.core_type<tc>, window_params = [{pipeline_mode = #tpu.pipeline_mode<synchronous>, transform_indices = @transform_0, window_bounds = array<i64: 8, 64>}, {pipeline_mode = #tpu.pipeline_mode<synchronous>, transform_indices = @transform_1, window_bounds = array<i64: 8, 64>}, {pipeline_mode = #tpu.pipeline_mode<synchronous>, transform_indices = @transform_2, window_bounds = array<i64: 8, 64>}, {pipeline_mode = #tpu.pipeline_mode<synchronous>, transform_indices = @transform_3, window_bounds = array<i64: 8, 1>}, {pipeline_mode = #tpu.pipeline_mode<synchronous>, transform_indices = @transform_4, window_bounds = array<i64: 8, 1>}, {pipeline_mode = #tpu.pipeline_mode<synchronous>, transform_indices = @transform_5, window_bounds = array<i64: 8, 1>}]} {
    %c0 = arith.constant 0 : index
    %c0_0 = arith.constant 0 : index
    %0 = vector.load %arg1[%c0, %c0_0] : memref<8x64xf32, #tpu.memory_space<vmem>>, vector<8x64xf32>
    %1 = arith.mulf %0, %0 : vector<8x64xf32>
    %cst = arith.constant dense<0.000000e+00> : vector<8xf32>
    %2 = vector.multi_reduction <add>, %1, %cst [1] : vector<8x64xf32> to vector<8xf32>
    %3 = vector.shape_cast %2 : vector<8xf32> to vector<8x1xf32>
    %4 = math.rsqrt %3 : vector<8x1xf32>
    %5 = vector.broadcast %4 : vector<8x1xf32> to vector<8x64xf32>
    %6 = arith.mulf %0, %5 : vector<8x64xf32>
    %7 = arith.truncf %6 : vector<8x64xf32> to vector<8x64xbf16>
    %c0_1 = arith.constant 0 : index
    %c0_2 = arith.constant 0 : index
    %8 = vector.load %arg3[%c0_1, %c0_2] : memref<8x64xbf16, #tpu.memory_space<vmem>>, vector<8x64xbf16>
    tpu.vector_store %arg3[%c0_1, %c0_2], %7 {strides = array<i32>} : memref<8x64xbf16, #tpu.memory_space<vmem>>, vector<8x64xbf16>,
    %c0_3 = arith.constant 0 : index
    %c0_4 = arith.constant 0 : index
    %9 = vector.load %arg2[%c0_3, %c0_4] : memref<8x64xbf16, #tpu.memory_space<vmem>>, vector<8x64xbf16>
    %10 = arith.extf %9 : vector<8x64xbf16> to vector<8x64xf32>
    %11 = arith.mulf %10, %10 : vector<8x64xf32>
    %cst_5 = arith.constant dense<0.000000e+00> : vector<8xf32>
    %12 = vector.multi_reduction <add>, %11, %cst_5 [1] : vector<8x64xf32> to vector<8xf32>
    %13 = vector.shape_cast %12 : vector<8xf32> to vector<8x1xf32>
    %14 = math.rsqrt %13 : vector<8x1xf32>
    %15 = vector.broadcast %14 : vector<8x1xf32> to vector<8x64xf32>
    %16 = arith.mulf %10, %15 : vector<8x64xf32>
    %17 = arith.mulf %6, %16 : vector<8x64xf32>
    %cst_6 = arith.constant dense<0.000000e+00> : vector<8xf32>
    %18 = vector.multi_reduction <add>, %17, %cst_6 [1] : vector<8x64xf32> to vector<8xf32>
    %19 = vector.shape_cast %18 : vector<8xf32> to vector<8x1xf32>
    %cst_7 = arith.constant -1.000000e+00 : f32
    %cst_8 = arith.constant 1.000000e+00 : f32
    %20 = vector.broadcast %cst_7 : f32 to vector<8x1xf32>
    %21 = arith.maximumf %20, %19 : vector<8x1xf32>
    %22 = vector.broadcast %cst_8 : f32 to vector<8x1xf32>
    %23 = arith.minimumf %22, %21 : vector<8x1xf32>
    %c0_9 = arith.constant 0 : index
    %c0_10 = arith.constant 0 : index
    %24 = vector.load %arg4[%c0_9, %c0_10] : memref<8x1xf32, #tpu.memory_space<vmem>>, vector<8x1xf32>
    tpu.vector_store %arg4[%c0_9, %c0_10], %23 {strides = array<i32>} : memref<8x1xf32, #tpu.memory_space<vmem>>, vector<8x1xf32>,
    %25 = arith.mulf %23, %23 : vector<8x1xf32>
    %cst_11 = arith.constant 1.000000e+00 : f32
    %26 = vector.broadcast %cst_11 : f32 to vector<8x1xf32>
    %27 = arith.subf %26, %25 : vector<8x1xf32>
    %cst_12 = arith.constant 0.000000e+00 : f32
    %28 = vector.broadcast %cst_12 : f32 to vector<8x1xf32>
    %29 = arith.maximumf %27, %28 : vector<8x1xf32>
    %30 = math.sqrt %29 : vector<8x1xf32>
    %cst_13 = arith.constant 0.87758255 : f32
    %31 = vector.broadcast %cst_13 : f32 to vector<8x1xf32>
    %32 = arith.mulf %23, %31 : vector<8x1xf32>
    %cst_14 = arith.constant 0.47942555 : f32
    %33 = vector.broadcast %cst_14 : f32 to vector<8x1xf32>
    %34 = arith.mulf %30, %33 : vector<8x1xf32>
    %35 = arith.subf %32, %34 : vector<8x1xf32>
    %c0_15 = arith.constant 0 : index
    %c0_16 = arith.constant 0 : index
    %36 = vector.load %arg5[%c0_15, %c0_16] : memref<8x1xf32, #tpu.memory_space<vmem>>, vector<8x1xf32>
    tpu.vector_store %arg5[%c0_15, %c0_16], %35 {strides = array<i32>} : memref<8x1xf32, #tpu.memory_space<vmem>>, vector<8x1xf32>,
    %cst_17 = arith.constant -0.87758255 : f32
    %37 = vector.broadcast %cst_17 : f32 to vector<8x1xf32>
    %38 = arith.cmpf ogt, %23, %37 : vector<8x1xf32>
    %cst_18 = arith.constant 0.239712775 : f32
    %39 = vector.broadcast %cst_18 : f32 to vector<8x1xf32>
    %40 = arith.subf %23, %39 : vector<8x1xf32>
    %41 = arith.select %38, %35, %40 : vector<8x1xi1>, vector<8x1xf32>
    %c0_19 = arith.constant 0 : index
    %c0_20 = arith.constant 0 : index
    %42 = vector.load %arg6[%c0_19, %c0_20] : memref<8x1xf32, #tpu.memory_space<vmem>>, vector<8x1xf32>
    tpu.vector_store %arg6[%c0_19, %c0_20], %41 {strides = array<i32>} : memref<8x1xf32, #tpu.memory_space<vmem>>, vector<8x1xf32>,
    return
  }
  func.func @transform_0(%arg0: i32) -> (i32, i32) {
    %c0_i32 = arith.constant 0 : i32
    %c0_i32_0 = arith.constant 0 : i32
    %c0_i32_1 = arith.constant 0 : i32
    return %c0_i32, %c0_i32_0 : i32, i32
  }
  func.func @transform_1(%arg0: i32) -> (i32, i32) {
    %c0_i32 = arith.constant 0 : i32
    %c0_i32_0 = arith.constant 0 : i32
    %c0_i32_1 = arith.constant 0 : i32
    return %c0_i32, %c0_i32_0 : i32, i32
  }
  func.func @transform_2(%arg0: i32) -> (i32, i32) {
    %c0_i32 = arith.constant 0 : i32
    %c0_i32_0 = arith.constant 0 : i32
    %c0_i32_1 = arith.constant 0 : i32
    return %c0_i32, %c0_i32_0 : i32, i32
  }
  func.func @transform_3(%arg0: i32) -> (i32, i32) {
    %c0_i32 = arith.constant 0 : i32
    %c0_i32_0 = arith.constant 0 : i32
    %c0_i32_1 = arith.constant 0 : i32
    return %c0_i32, %c0_i32_0 : i32, i32
  }
  func.func @transform_4(%arg0: i32) -> (i32, i32) {
    %c0_i32 = arith.constant 0 : i32
    %c0_i32_0 = arith.constant 0 : i32
    %c0_i32_1 = arith.constant 0 : i32
    return %c0_i32, %c0_i32_0 : i32, i32
  }
  func.func @transform_5(%arg0: i32) -> (i32, i32) {
    %c0_i32 = arith.constant 0 : i32
    %c0_i32_0 = arith.constant 0 : i32
    %c0_i32_1 = arith.constant 0 : i32
    return %c0_i32, %c0_i32_0 : i32, i32
  }
}

</mosaic_0001>

<llo_original>
// kernel: _forward_impl.2
$region0: #{_forward_impl.2}
  #allocation0 [shape = 'u32[]', space=smem, size = 0x4, offset = 0x4, fixed_abs, tag = 'smem constant byte address 0x4 - core index']
  #allocation1 [shape = 'u32[144,128]{1,0:T(1,128)}', space=vmem, size = 0x12000, scoped, tag = 'internal scratch']
  %s0 = inlined_call_operand.vmem [shape: f32[8,64], index: 0, kind: input, shape index: {}]
  %s1 = inlined_call_operand.vmem [shape: bf16[8,64], index: 1, kind: input, shape index: {}]
  %s2 = inlined_call_operand.vmem [shape: bf16[8,64], index: 2, kind: output, shape index: {0}]
  %s3 = inlined_call_operand.vmem [shape: f32[8,1], index: 3, kind: output, shape index: {1}]
  %s4 = inlined_call_operand.vmem [shape: f32[8,1], index: 4, kind: output, shape index: {2}]
  %s5 = inlined_call_operand.vmem [shape: f32[8,1], index: 5, kind: output, shape index: {3}]
  %6 = xla_tuple %s2, %s3, %s4, %s5
  %s7 = sld [smem:[#allocation0]]
  $region42: #{_forward_impl.2} parent=0
    _
  %s9 = ssub.s32 1, %s7
  %s10 = scalar_select 0, %s9, %s7
  // Predicated region
  $region2: #{_forward_impl.2} parent=0 // pred_check
    _
  $region3: #{_forward_impl.2} parent=0 // pred_check_branch
    %12 = sbr.rel (0) target = $region5
  $region4: #{_forward_impl.2} parent=0 // pred_region
    _
  $region5: #{_forward_impl.2} parent=0 // pred_fallthru
    _
  // Predicated region
  $region6: #{_forward_impl.2} parent=0 // pred_check
    _
  $region7: #{_forward_impl.2} parent=0 // pred_check_branch
    %14 = sbr.rel (0) target = $region9
  $region8: #{_forward_impl.2} parent=0 // pred_region
    _
  $region9: #{_forward_impl.2} parent=0 // pred_fallthru
    _
  %v15 = vld [vmem:[%s0] sm:$0xff]
  %v16 = vmul.f32 %v15, %v15
  %vm17 = vcmask 523264
  %v18 = vsel %vm17, %v16, 0.0
  %19 = vadd.xlane.f32.xlu0 %v18
  %v20 = vpop.xlane.xlu0 %19
  %v21 = vrsqrt.pop %v20
  %v22 = vmul.f32 %v15, %v21
  %v23 = vpack.c.bf16 %v22, %v22
  %vm24 = vcmask 519168
  %25 = vst.msk [vmem:[%s2] sm:$0xf] %vm24, %v23
  %v26 = vld [vmem:[%s1] sm:$0xf]
  %v27 = vunpack.c.l.bf16 %v26
  %v28 = vmul.f32 %v27, %v27
  %v29 = vsel %vm17, %v28, 0.0
  %30 = vadd.xlane.f32.xlu0 %v29
  %v31 = vpop.xlane.xlu0 %30
  %v32 = vrsqrt.pop %v31
  %v33 = vmul.f32 %v27, %v32
  %v34 = vmul.f32 %v22, %v33
  %v35 = vsel %vm17, %v34, 0.0
  %36 = vadd.xlane.f32.xlu0 %v35
  %v37 = vpop.xlane.xlu0 %36
  %v38 = vmax.f32 %v37, -1.0
  %v39 = vmin.f32 %v38, 1.0
  %vm40 = vcmask 7168
  %41 = vst.msk [vmem:[%s3] sm:$0xff] %vm40, %v39
  %v42 = vmul.f32 %v39, %v39
  %v43 = vsub.f32 1.0, %v42
  %v44 = vmax.f32 %v43, 0.0
  %v45 = vrsqrt.pop %v44
  %v46 = vmul.f32 %v44, %v45
  %vm47 = vcmp.eq.f32.partialorder %v44, inf
  %v48 = vsel %vm47, %v44, %v46
  %vm49 = vcmp.eq.f32.partialorder %v44, 0.0
  %v50 = vand.u32 %v44, 2147483648
  %v51 = vsel %vm49, %v50, %v48
  %v52 = vmul.f32 %v39, 0.87758255
  %v53 = vmul.f32 %v51, 0.47942555
  %v54 = vsub.f32 %v52, %v53
  %55 = vst.msk [vmem:[%s4] sm:$0xff] %vm40, %v54
  %vm56 = vcmp.gt.f32.partialorder %v39, -0.87758255
  %v57 = vsub.f32 %v39, 0.23971277
  %v58 = vsel %vm56, %v54, %v57
  %59 = vst.msk [vmem:[%s5] sm:$0xff] %vm40, %v58
  // Predicated region
  $region10: #{_forward_impl.2} parent=0 // pred_check
    _
  $region11: #{_forward_impl.2} parent=0 // pred_check_branch
    %61 = sbr.rel (0) target = $region13
  $region12: #{_forward_impl.2} parent=0 // pred_region
    _
  $region13: #{_forward_impl.2} parent=0 // pred_fallthru
    _
  // Predicated region
  $region14: #{_forward_impl.2} parent=0 // pred_check
    _
  $region15: #{_forward_impl.2} parent=0 // pred_check_branch
    %63 = sbr.rel (0) target = $region17
  $region16: #{_forward_impl.2} parent=0 // pred_region
    _
  $region17: #{_forward_impl.2} parent=0 // pred_fallthru
    _
  // Predicated region
  $region18: #{_forward_impl.2} parent=0 // pred_check
    _
  $region19: #{_forward_impl.2} parent=0 // pred_check_branch
    %65 = sbr.rel (0) target = $region21
  $region20: #{_forward_impl.2} parent=0 // pred_region
    _
  $region21: #{_forward_impl.2} parent=0 // pred_fallthru
    _
  // Predicated region
  $region22: #{_forward_impl.2} parent=0 // pred_check
    _
  $region23: #{_forward_impl.2} parent=0 // pred_check_branch
    %67 = sbr.rel (0) target = $region25
  $region24: #{_forward_impl.2} parent=0 // pred_region
    _
  $region25: #{_forward_impl.2} parent=0 // pred_fallthru
    _
  // Predicated region
  $region26: #{_forward_impl.2} parent=0 // pred_check
    _
  $region27: #{_forward_impl.2} parent=0 // pred_check_branch
    %69 = sbr.rel (0) target = $region29
  $region28: #{_forward_impl.2} parent=0 // pred_region
    _
  $region29: #{_forward_impl.2} parent=0 // pred_fallthru
    _
  // Predicated region
  $region30: #{_forward_impl.2} parent=0 // pred_check
    _
  $region31: #{_forward_impl.2} parent=0 // pred_check_branch
    %71 = sbr.rel (0) target = $region33
  $region32: #{_forward_impl.2} parent=0 // pred_region
    _
  $region33: #{_forward_impl.2} parent=0 // pred_fallthru
    _
  // Predicated region
  $region34: #{_forward_impl.2} parent=0 // pred_check
    _
  $region35: #{_forward_impl.2} parent=0 // pred_check_branch
    %73 = sbr.rel (0) target = $region37
  $region36: #{_forward_impl.2} parent=0 // pred_region
    _
  $region37: #{_forward_impl.2} parent=0 // pred_fallthru
    _
  // Predicated region
  $region38: #{_forward_impl.2} parent=0 // pred_check
    _
  $region39: #{_forward_impl.2} parent=0 // pred_check_branch
    %75 = sbr.rel (0) target = $region41
  $region40: #{_forward_impl.2} parent=0 // pred_region
    _
  $region41: #{_forward_impl.2} parent=0 // pred_fallthru
    _

// kernel: _forward_impl.3
$region0: #{_forward_impl.3}
  #allocation0 [shape = 'u32[]', space=smem, size = 0x4, offset = 0x4, fixed_abs, tag = 'smem constant byte address 0x4 - core index']
  #allocation1 [shape = 'u32[144,128]{1,0:T(1,128)}', space=vmem, size = 0x12000, scoped, tag = 'internal scratch']
  #allocation2 [shape = 'f32[1,1]{1,0:T(1,128)S(6)}', space=smem, size = 0x200, scoped, tag = 'scoped memory for _forward_impl.3']
  %s0 = inlined_call_operand.vmem [shape: s32[8,1], index: 0, kind: input, shape index: {}]
  %s1 = inlined_call_operand.<no memory space> [shape: f32[1,1], index: 1, kind: input, shape index: {}]
  %s2 = inlined_call_operand.vmem [shape: bf16[8,64], index: 2, kind: input, shape index: {}]
  %s3 = inlined_call_operand.vmem [shape: bf16[64,512], index: 3, kind: input, shape index: {}]
  %s4 = inlined_call_operand.vmem [shape: f32[8,1], index: 4, kind: input, shape index: {}]
  %s5 = inlined_call_operand.vmem [shape: f32[8,1], index: 5, kind: input, shape index: {}]
  %s6 = inlined_call_operand.hbm [shape: f32[8,512], index: 6, kind: output, shape index: {}]
  %s7 = sld [smem:[#allocation0]]
  $region95: #{_forward_impl.3} parent=0
    _
  %s9 = ssub.s32 1, %s7
  %s10 = scalar_select 0, %s9, %s7
  %11 = sst [smem:[#allocation2]] %s1
  $region1: #{_forward_impl.3} parent=0
    #allocation3 [shape = 'u8[65536]{0}', space=vmem, size = 0x10000, scoped, tag = 'input window, operand 3']
    #allocation4 [shape = 'u8[16384]{0}', space=vmem, size = 0x4000, scoped, tag = 'output window, operand 0']
    #allocation5 [shape = 's32[2]{0}', space=sflag, size = 0x8, scoped, tag = 'scoped memory for _forward_impl.3']
    %12 = vsyncpa [#allocation5], 0
    %s13 = scalar_lea.sflag [#allocation5], 1
    %14 = vsyncpa %s13, 0
    loop: start=0, step=1, limit=4
    $region2: #{_forward_impl.3} parent=1 // loop_pre_header
      _
    $region3: #{_forward_impl.3} parent=1 // loop_header
      %s16 = sphi 0, %s20
      %p17 = scmp.ge.s32.totalorder %s16, 4
      %s24 = sphi 0, %s24
      %s26 = sphi 0, %s24
      %s27 = sphi 0, %s26
      %s41 = sphi 0, %s27
      %s45 = sphi 0, %s45
      %s47 = sphi 0, %s45
      %s48 = sphi 0, %s47
      %s62 = sphi 0, %s48
      %s66 = sphi 0, %s66
      %s68 = sphi 0, %s66
      %s69 = sphi 0, %s68
      %s83 = sphi 0, %s69
      %s89 = sphi 0, %s91
      %s92 = sphi 0, %s89
      %s93 = sphi 0, %s92
      %s109 = sphi 0, %s93
      %s113 = sphi 0, %s113
      %s115 = sphi 0, %s113
      %s116 = sphi 0, %s115
      %s130 = sphi 0, %s116
      %s134 = sphi 0, %s134
      %s136 = sphi 0, %s134
      %s137 = sphi 0, %s136
      %s151 = sphi 0, %s137
      %s157 = sphi 0, %s159
      %s160 = sphi 0, %s157
      %s161 = sphi 0, %s160
      %s177 = sphi 0, %s161
    $region4: #{_forward_impl.3} parent=1 // loop_header_branch
      %19 = sbr.rel (%p17) target = $region8
    $region5: #{_forward_impl.3} parent=1 // loop_body
      %s21 = ssub.s32 %s16, 1
      %s22 = ssub.s32 %s16, 2
      %s23 = sadd.s32 %s16, 1
      %s25 = sadd.s32 %s24, 1
      %p28 = scmp.eq.s32.totalorder %s16, 1
      %p29 = scmp.ne.s32.totalorder %s24, %s26
      %p30 = scmp.eq.s32.totalorder %s16, 0
      %p31 = por %p29, %p30
      %p32 = scmp.ne.s32.totalorder %s24, %s26
      %p33 = scmp.eq.s32.totalorder %s21, 1
      %p34 = por %p32, %p33
      %p35 = scmp.ne.s32.totalorder %s26, %s27
      %p36 = scmp.eq.s32.totalorder %s21, 0
      %p37 = por %p35, %p36
      %p38 = scmp.ne.s32.totalorder %s26, %s27
      %p39 = scmp.eq.s32.totalorder %s22, 1
      %p40 = por %p38, %p39
      %p42 = scmp.ne.s32.totalorder %s27, %s41
      %p43 = scmp.eq.s32.totalorder %s22, 0
      %p44 = por %p42, %p43
      %s46 = sadd.s32 %s45, 1
      %p49 = scmp.eq.s32.totalorder %s16, 1
      %p50 = scmp.ne.s32.totalorder %s45, %s47
      %p51 = scmp.eq.s32.totalorder %s16, 0
      %p52 = por %p50, %p51
      %p53 = scmp.ne.s32.totalorder %s45, %s47
      %p54 = scmp.eq.s32.totalorder %s21, 1
      %p55 = por %p53, %p54
      %p56 = scmp.ne.s32.totalorder %s47, %s48
      %p57 = scmp.eq.s32.totalorder %s21, 0
      %p58 = por %p56, %p57
      %p59 = scmp.ne.s32.totalorder %s47, %s48
      %p60 = scmp.eq.s32.totalorder %s22, 1
      %p61 = por %p59, %p60
      %p63 = scmp.ne.s32.totalorder %s48, %s62
      %p64 = scmp.eq.s32.totalorder %s22, 0
      %p65 = por %p63, %p64
      %s67 = sadd.s32 %s66, 1
      %p70 = scmp.eq.s32.totalorder %s16, 1
      %p71 = scmp.ne.s32.totalorder %s66, %s68
      %p72 = scmp.eq.s32.totalorder %s16, 0
      %p73 = por %p71, %p72
      %p74 = scmp.ne.s32.totalorder %s66, %s68
      %p75 = scmp.eq.s32.totalorder %s21, 1
      %p76 = por %p74, %p75
      %p77 = scmp.ne.s32.totalorder %s68, %s69
      %p78 = scmp.eq.s32.totalorder %s21, 0
      %p79 = por %p77, %p78
      %p80 = scmp.ne.s32.totalorder %s68, %s69
      %p81 = scmp.eq.s32.totalorder %s22, 1
      %p82 = por %p80, %p81
      %p84 = scmp.ne.s32.totalorder %s69, %s83
      %p85 = scmp.eq.s32.totalorder %s22, 0
      %p86 = por %p84, %p85
      %s87 = ssub.s32 %s16, %s23
      %p88 = scmp.eq.s32.totalorder %s87, 0
      %s90 = sadd.s32 %s89, 1
      %s91 = scalar_select %p88, %s89, %s90
      %p94 = pneg %p88
      %p95 = scmp.eq.s32.totalorder %s16, 1
      %p96 = por %p94, %p95
      %p97 = scmp.ne.s32.totalorder %s89, %s92
      %p98 = scmp.eq.s32.totalorder %s16, 0
      %p99 = por %p97, %p98
      %p100 = scmp.ne.s32.totalorder %s89, %s92
      %p101 = scmp.eq.s32.totalorder %s21, 1
      %p102 = por %p100, %p101
      %p103 = scmp.ne.s32.totalorder %s92, %s93
      %p104 = scmp.eq.s32.totalorder %s21, 0
      %p105 = por %p103, %p104
      %p106 = scmp.ne.s32.totalorder %s92, %s93
      %p107 = scmp.eq.s32.totalorder %s22, 1
      %p108 = por %p106, %p107
      %p110 = scmp.ne.s32.totalorder %s93, %s109
      %p111 = scmp.eq.s32.totalorder %s22, 0
      %p112 = por %p110, %p111
      %s114 = sadd.s32 %s113, 1
      %p117 = scmp.eq.s32.totalorder %s16, 1
      %p118 = scmp.ne.s32.totalorder %s113, %s115
      %p119 = scmp.eq.s32.totalorder %s16, 0
      %p120 = por %p118, %p119
      %p121 = scmp.ne.s32.totalorder %s113, %s115
      %p122 = scmp.eq.s32.totalorder %s21, 1
      %p123 = por %p121, %p122
      %p124 = scmp.ne.s32.totalorder %s115, %s116
      %p125 = scmp.eq.s32.totalorder %s21, 0
      %p126 = por %p124, %p125
      %p127 = scmp.ne.s32.totalorder %s115, %s116
      %p128 = scmp.eq.s32.totalorder %s22, 1
      %p129 = por %p127, %p128
      %p131 = scmp.ne.s32.totalorder %s116, %s130
      %p132 = scmp.eq.s32.totalorder %s22, 0
      %p133 = por %p131, %p132
      %s135 = sadd.s32 %s134, 1
      %p138 = scmp.eq.s32.totalorder %s16, 1
      %p139 = scmp.ne.s32.totalorder %s134, %s136
      %p140 = scmp.eq.s32.totalorder %s16, 0
      %p141 = por %p139, %p140
      %p142 = scmp.ne.s32.totalorder %s134, %s136
      %p143 = scmp.eq.s32.totalorder %s21, 1
      %p144 = por %p142, %p143
      %p145 = scmp.ne.s32.totalorder %s136, %s137
      %p146 = scmp.eq.s32.totalorder %s21, 0
      %p147 = por %p145, %p146
      %p148 = scmp.ne.s32.totalorder %s136, %s137
      %p149 = scmp.eq.s32.totalorder %s22, 1
      %p150 = por %p148, %p149
      %p152 = scmp.ne.s32.totalorder %s137, %s151
      %p153 = scmp.eq.s32.totalorder %s22, 0
      %p154 = por %p152, %p153
      %s155 = ssub.s32 %s16, %s23
      %p156 = scmp.eq.s32.totalorder %s155, 0
      %s158 = sadd.s32 %s157, 1
      %s159 = scalar_select %p156, %s157, %s158
      %p162 = pneg %p156
      %p163 = scmp.eq.s32.totalorder %s16, 1
      %p164 = por %p162, %p163
      %p165 = scmp.ne.s32.totalorder %s157, %s160
      %p166 = scmp.eq.s32.totalorder %s16, 0
      %p167 = por %p165, %p166
      %p168 = scmp.ne.s32.totalorder %s157, %s160
      %p169 = scmp.eq.s32.totalorder %s21, 1
      %p170 = por %p168, %p169
      %p171 = scmp.ne.s32.totalorder %s160, %s161
      %p172 = scmp.eq.s32.totalorder %s21, 0
      %p173 = por %p171, %p172
      %p174 = scmp.ne.s32.totalorder %s160, %s161
      %p175 = scmp.eq.s32.totalorder %s22, 1
      %p176 = por %p174, %p175
      %p178 = scmp.ne.s32.totalorder %s161, %s177
      %p179 = scmp.eq.s32.totalorder %s22, 0
      %p180 = por %p178, %p179
      %p181 = scmp.le.s32.totalorder 1, %s16
      %p182 = scmp.lt.s32.totalorder %s16, 3
      %p183 = pnand %p181, %p182
      %p184 = pneg %p183
      // Predicated region
      $region9: #{_forward_impl.3} parent=5 // pred_check
        _
      $region10: #{_forward_impl.3} parent=5 // pred_check_branch
        %186 = sbr.rel (%p183) target = $region12
      $region11: #{_forward_impl.3} parent=5 // pred_region
        %s187 = ssub.s32 %s16, 1
        // Predicated region
        $region13: #{_forward_impl.3} parent=11 // pred_check
          %p188 = pneg %p37
        $region14: #{_forward_impl.3} parent=11 // pred_check_branch
          %190 = sbr.rel (%p188) target = $region16
        $region15: #{_forward_impl.3} parent=11 // pred_region
          _
        $region16: #{_forward_impl.3} parent=11 // pred_fallthru
          _
        // Predicated region
        $region17: #{_forward_impl.3} parent=11 // pred_check
          %p191 = pneg %p58
        $region18: #{_forward_impl.3} parent=11 // pred_check_branch
          %193 = sbr.rel (%p191) target = $region20
        $region19: #{_forward_impl.3} parent=11 // pred_region
          _
        $region20: #{_forward_impl.3} parent=11 // pred_fallthru
          _
        // Predicated region
        $region21: #{_forward_impl.3} parent=11 // pred_check
          %p194 = pneg %p79
        $region22: #{_forward_impl.3} parent=11 // pred_check_branch
          %196 = sbr.rel (%p194) target = $region24
        $region23: #{_forward_impl.3} parent=11 // pred_region
          _
        $region24: #{_forward_impl.3} parent=11 // pred_fallthru
          _
        // Predicated region
        $region25: #{_forward_impl.3} parent=11 // pred_check
          %p197 = pneg %p126
        $region26: #{_forward_impl.3} parent=11 // pred_check_branch
          %199 = sbr.rel (%p197) target = $region28
        $region27: #{_forward_impl.3} parent=11 // pred_region
          _
        $region28: #{_forward_impl.3} parent=11 // pred_fallthru
          _
        // Predicated region
        $region29: #{_forward_impl.3} parent=11 // pred_check
          %p200 = pneg %p147
        $region30: #{_forward_impl.3} parent=11 // pred_check_branch
          %202 = sbr.rel (%p200) target = $region32
        $region31: #{_forward_impl.3} parent=11 // pred_region
          _
        $region32: #{_forward_impl.3} parent=11 // pred_fallthru
          _
      $region12: #{_forward_impl.3} parent=5 // pred_fallthru
        _
      %p203 = scmp.lt.s32.totalorder %s16, 2
      // Predicated region
      $region33: #{_forward_impl.3} parent=5 // pred_check
        %p204 = pneg %p203
      $region34: #{_forward_impl.3} parent=5 // pred_check_branch
        %206 = sbr.rel (%p204) target = $region36
      $region35: #{_forward_impl.3} parent=5 // pred_region
        // Predicated region
        $region37: #{_forward_impl.3} parent=35 // pred_check
          %p207 = pneg %p99
        $region38: #{_forward_impl.3} parent=35 // pred_check_branch
          %209 = sbr.rel (%p207) target = $region40
        $region39: #{_forward_impl.3} parent=35 // pred_region
          %s210 = sand.u32 %s89, 1
          %s211 = sand.u32 %s89, 1
          %s212 = smul.addr %s211, 64
          %s213 = scalar_lea.vmem [#allocation3], %s212
          %s214 = smul.u32 2, %s16
          %s215 = smul.addr %s214, 4
          %s216 = scalar_lea.vmem %s3, %s215
          // Predicated region
          $region41: #{_forward_impl.3} parent=39 // pred_check
            _
          $region42: #{_forward_impl.3} parent=39 // pred_check_branch
            %218 = sbr.rel (0) target = $region44
          $region43: #{_forward_impl.3} parent=39 // pred_region
            // Predicated region
            $region45: #{_forward_impl.3} parent=43 // pred_check
              _
            $region46: #{_forward_impl.3} parent=43 // pred_check_branch
              %220 = sbr.rel (0) target = $region48
            $region47: #{_forward_impl.3} parent=43 // pred_region
              // Predicated region
              $region60: #{_forward_impl.3} parent=47 // pred_check
                _
              $region61: #{_forward_impl.3} parent=47 // pred_check_branch
                %249 = sbr.rel (0) target = $region63
              $region62: #{_forward_impl.3} parent=47 // pred_region
                loop: start=0, step=1, limit=1
                $region64: #{_forward_impl.3} parent=62 // loop_pre_header
                  _
                $region65: #{_forward_impl.3} parent=62 // loop_header
                  %s251 = sphi 0, %s255
                  %p252 = scmp.ge.s32.totalorder %s251, 1
                  %s256 = sphi %s216, %s216
                  %s257 = sphi %s213, %s213
                $region66: #{_forward_impl.3} parent=62 // loop_header_branch
                  %254 = sbr.rel (%p252) target = $region70
                $region67: #{_forward_impl.3} parent=62 // loop_body
                  %v258 = vld [vmem:[%s256] sm:$0xff]
                  %259 = vst [vmem:[%s257] sm:$0xff] %v258
                  %v260 = vld [vmem:[%s256 + $0x10] sm:$0xff]
                  %261 = vst [vmem:[%s257 + $0x8] sm:$0xff] %v260
                  %v262 = vld [vmem:[%s256 + $0x20] sm:$0xff]
                  %263 = vst [vmem:[%s257 + $0x10] sm:$0xff] %v262
                  %v264 = vld [vmem:[%s256 + $0x30] sm:$0xff]
                  %265 = vst [vmem:[%s257 + $0x18] sm:$0xff] %v264
                  %v266 = vld [vmem:[%s256 + $0x40] sm:$0xff]
                  %267 = vst [vmem:[%s257 + $0x20] sm:$0xff] %v266
                  %v268 = vld [vmem:[%s256 + $0x50] sm:$0xff]
                  %269 = vst [vmem:[%s257 + $0x28] sm:$0xff] %v268
                  %v270 = vld [vmem:[%s256 + $0x60] sm:$0xff]
                  %271 = vst [vmem:[%s257 + $0x30] sm:$0xff] %v270
                  %v272 = vld [vmem:[%s256 + $0x70] sm:$0xff]
                  %273 = vst [vmem:[%s257 + $0x38] sm:$0xff] %v272
                $region68: #{_forward_impl.3} parent=62 // loop_footer
                  %s255 = sadd.s32 1, %s251
                $region69: #{_forward_impl.3} parent=62 // loop_footer_branch
                  %250 = sbr.rel target = $region65
                $region70: #{_forward_impl.3} parent=62 // loop_exit
                  _
              $region63: #{_forward_impl.3} parent=47 // pred_fallthru
                _
              // Predicated region
              $region71: #{_forward_impl.3} parent=47 // pred_check
                _
              $region72: #{_forward_impl.3} parent=47 // pred_check_branch
                %275 = sbr.rel target = $region74
              $region73: #{_forward_impl.3} parent=47 // pred_region
                _
              $region74: #{_forward_impl.3} parent=47 // pred_fallthru
                _
            $region48: #{_forward_impl.3} parent=43 // pred_fallthru
              _
            // Predicated region
            $region49: #{_forward_impl.3} parent=43 // pred_check
              _
            $region50: #{_forward_impl.3} parent=43 // pred_check_branch
              %222 = sbr.rel target = $region52
            $region51: #{_forward_impl.3} parent=43 // pred_region
              loop: start=0, step=1, limit=1
              $region53: #{_forward_impl.3} parent=51 // loop_pre_header
                _
              $region54: #{_forward_impl.3} parent=51 // loop_header
                %s225 = sphi 0, %s229
                %p226 = scmp.ge.s32.totalorder %s225, 1
                %s230 = sphi %s216, %s216
                %s231 = sphi %s213, %s213
              $region55: #{_forward_impl.3} parent=51 // loop_header_branch
                %228 = sbr.rel (%p226) target = $region59
              $region56: #{_forward_impl.3} parent=51 // loop_body
                %v232 = vld [vmem:[%s230] sm:$0xff]
                %233 = vst [vmem:[%s231] sm:$0xff] %v232
                %v234 = vld [vmem:[%s230 + $0x10] sm:$0xff]
                %235 = vst [vmem:[%s231 + $0x8] sm:$0xff] %v234
                %v236 = vld [vmem:[%s230 + $0x20] sm:$0xff]
                %237 = vst [vmem:[%s231 + $0x10] sm:$0xff] %v236
                %v238 = vld [vmem:[%s230 + $0x30] sm:$0xff]
                %239 = vst [vmem:[%s231 + $0x18] sm:$0xff] %v238
                %v240 = vld [vmem:[%s230 + $0x40] sm:$0xff]
                %241 = vst [vmem:[%s231 + $0x20] sm:$0xff] %v240
                %v242 = vld [vmem:[%s230 + $0x50] sm:$0xff]
                %243 = vst [vmem:[%s231 + $0x28] sm:$0xff] %v242
                %v244 = vld [vmem:[%s230 + $0x60] sm:$0xff]
                %245 = vst [vmem:[%s231 + $0x30] sm:$0xff] %v244
                %v246 = vld [vmem:[%s230 + $0x70] sm:$0xff]
                %247 = vst [vmem:[%s231 + $0x38] sm:$0xff] %v246
              $region57: #{_forward_impl.3} parent=51 // loop_footer
                %s229 = sadd.s32 1, %s225
              $region58: #{_forward_impl.3} parent=51 // loop_footer_branch
                %224 = sbr.rel target = $region54
              $region59: #{_forward_impl.3} parent=51 // loop_exit
                _
            $region52: #{_forward_impl.3} parent=43 // pred_fallthru
              _
          $region44: #{_forward_impl.3} parent=39 // pred_fallthru
            _
          %276 = vnop
        $region40: #{_forward_impl.3} parent=35 // pred_fallthru
          _
      $region36: #{_forward_impl.3} parent=5 // pred_fallthru
        _
      %p277 = scmp.le.s32.totalorder 1, %s16
      %p278 = scmp.lt.s32.totalorder %s16, 3
      %p279 = pnand %p277, %p278
      %p280 = pneg %p279
      // Predicated region
      $region75: #{_forward_impl.3} parent=5 // pred_check
        _
      $region76: #{_forward_impl.3} parent=5 // pred_check_branch
        %282 = sbr.rel (%p279) target = $region78
      $region77: #{_forward_impl.3} parent=5 // pred_region
        %s283 = ssub.s32 %s16, 1
        %s284 = sand.u32 %s92, 1
        %s285 = sand.u32 %s92, 1
        %s286 = smul.addr %s285, 64
        %s287 = scalar_lea.vmem [#allocation3], %s286
        // Predicated region
        $region79: #{_forward_impl.3} parent=77 // pred_check
          %p288 = pneg %p105
        $region80: #{_forward_impl.3} parent=77 // pred_check_branch
          %290 = sbr.rel (%p288) target = $region82
        $region81: #{_forward_impl.3} parent=77 // pred_region
          _
        $region82: #{_forward_impl.3} parent=77 // pred_fallthru
          _
        %p291 = pneg %p37
        %p292 = pneg %p34
        %p293 = pneg %p58
        %p294 = pneg %p55
        %p295 = pneg %p79
        %p296 = pneg %p76
        %s297 = sand.u32 %s92, 1
        %s298 = sand.u32 %s92, 1
        %s299 = smul.addr %s298, 64
        %s300 = scalar_lea.vmem [#allocation3], %s299
        %p301 = pneg %p105
        %p302 = pneg %p102
        %p303 = pneg %p126
        %p304 = pneg %p123
        %p305 = pneg %p147
        %p306 = pneg %p144
        %p307 = pneg %p173
        %p308 = pneg %p170
        %s309 = sand.u32 %s160, 1
        %s310 = scalar_lea.sflag [#allocation5], %s309
        %s311 = sand.u32 %s160, 1
        %s312 = smul.addr %s311, 16
        %s313 = scalar_lea.vmem [#allocation4], %s312
        %s314 = smul.u32 2, %s21
        %s315 = smul.u32 2, %s21
        %v317 = vld [vmem:[%s287] sm:$0xff]
        %v318 = vld [vmem:[%s287 + $0x8] sm:$0xff]
        %v319 = vld [vmem:[%s287 + $0x10] sm:$0xff]
        %v320 = vld [vmem:[%s287 + $0x18] sm:$0xff]
        %v321 = vld [vmem:[%s287 + $0x20] sm:$0xff]
        %v322 = vld [vmem:[%s287 + $0x28] sm:$0xff]
        %v323 = vld [vmem:[%s287 + $0x30] sm:$0xff]
        %v324 = vld [vmem:[%s287 + $0x38] sm:$0xff]
        %v325 = vunpack.c.l.bf16 %v317
        %v326 = vunpack.c.h.bf16 %v317
        %v327 = vunpack.c.l.bf16 %v318
        %v328 = vunpack.c.h.bf16 %v318
        %v329 = vunpack.c.l.bf16 %v319
        %v330 = vunpack.c.h.bf16 %v319
        %v331 = vunpack.c.l.bf16 %v320
        %v332 = vunpack.c.h.bf16 %v320
        %v333 = vunpack.c.l.bf16 %v321
        %v334 = vunpack.c.h.bf16 %v321
        %v335 = vunpack.c.l.bf16 %v322
        %v336 = vunpack.c.h.bf16 %v322
        %v337 = vunpack.c.l.bf16 %v323
        %v338 = vunpack.c.h.bf16 %v323
        %v339 = vunpack.c.l.bf16 %v324
        %v340 = vunpack.c.h.bf16 %v324
        %v341 = vmul.f32 %v325, %v325
        %v342 = vmul.f32 %v326, %v326
        %v343 = vmul.f32 %v327, %v327
        %v344 = vmul.f32 %v328, %v328
        %v345 = vmul.f32 %v329, %v329
        %v346 = vmul.f32 %v330, %v330
        %v347 = vmul.f32 %v331, %v331
        %v348 = vmul.f32 %v332, %v332
        %v349 = vmul.f32 %v333, %v333
        %v350 = vmul.f32 %v334, %v334
        %v351 = vmul.f32 %v335, %v335
        %v352 = vmul.f32 %v336, %v336
        %v353 = vmul.f32 %v337, %v337
        %v354 = vmul.f32 %v338, %v338
        %v355 = vmul.f32 %v339, %v339
        %v356 = vmul.f32 %v340, %v340
        %v357 = vadd.f32 %v341, %v343
        %v358 = vadd.f32 %v357, %v345
        %v359 = vadd.f32 %v358, %v347
        %v360 = vadd.f32 %v359, %v349
        %v361 = vadd.f32 %v360, %v351
        %v362 = vadd.f32 %v361, %v353
        %v363 = vadd.f32 %v362, %v355
        %v364 = vrot.slane %v363, 4
        %v365 = vadd.f32 %v363, %v364
        %v366 = vrot.slane %v365, 2
        %v367 = vadd.f32 %v365, %v366
        %v368 = vrot.slane %v367, 1
        %v369 = vadd.f32 %v367, %v368
        %v370 = vadd.f32 %v342, %v344
        %v371 = vadd.f32 %v370, %v346
        %v372 = vadd.f32 %v371, %v348
        %v373 = vadd.f32 %v372, %v350
        %v374 = vadd.f32 %v373, %v352
        %v375 = vadd.f32 %v374, %v354
        %v376 = vadd.f32 %v375, %v356
        %v377 = vrot.slane %v376, 4
        %v378 = vadd.f32 %v376, %v377
        %v379 = vrot.slane %v378, 2
        %v380 = vadd.f32 %v378, %v379
        %v381 = vrot.slane %v380, 1
        %v382 = vadd.f32 %v380, %v381
        %v383 = vmax.f32 %v369, 1e-30
        %v384 = vmax.f32 %v382, 1e-30
        %v385 = vrsqrt.pop %v383
        %v386 = vrsqrt.pop %v384
        %v387 = vld [vmem:[%s2] sm:$0xf]
        %v396 = vunpack.c.l.b16 %v317
        %v397 = vunpack.c.h.b16 %v317
        %v398 = vunpack.c.l.b16 %v318
        %v399 = vunpack.c.h.b16 %v318
        %v400 = vunpack.c.l.b16 %v319
        %v401 = vunpack.c.h.b16 %v319
        %v402 = vunpack.c.l.b16 %v320
        %v403 = vunpack.c.h.b16 %v320
        %v404 = vunpack.c.l.b16 %v321
        %v405 = vunpack.c.h.b16 %v321
        %v406 = vunpack.c.l.b16 %v322
        %v407 = vunpack.c.h.b16 %v322
        %v408 = vunpack.c.l.b16 %v323
        %v409 = vunpack.c.h.b16 %v323
        %v410 = vunpack.c.l.b16 %v324
        %v411 = vunpack.c.h.b16 %v324
        %v412 = vpack.c.b16 %v398, %v396
        %v413 = vpack.c.b16 %v399, %v397
        %v414 = vpack.c.b16 %v402, %v400
        %v415 = vpack.c.b16 %v403, %v401
        %v416 = vpack.c.b16 %v406, %v404
        %v417 = vpack.c.b16 %v407, %v405
        %v418 = vpack.c.b16 %v410, %v408
        %v419 = vpack.c.b16 %v411, %v409
        %vm428 = vcmask 523264
        %v430 = vsel %vm428, %v387, 0
        %432 = vmatprep.subr.bf16.mxu0 %v413
        %433 = vmatpush1.bf16.msra.mxu0 %v412
        %434 = vmatprep.subr.bf16.mxu0 %v415
        %435 = vmatpush1.bf16.msra.mxu0 %v414
        %436 = vmatprep.subr.bf16.mxu0 %v417
        %437 = vmatpush1.bf16.msra.mxu0 %v416
        %438 = vmatprep.subr.bf16.mxu0 %v419
        %439 = vmatpush1.bf16.msra.mxu0 %v418
        %440 = vmatprep.subr.bf16.mxu0 0
        %441 = vmatpush1.bf16.msra.mxu0 0
        %442 = vmatprep.subr.bf16.mxu0 0
        %443 = vmatpush1.bf16.msra.mxu0 0
        %444 = vmatprep.subr.bf16.mxu0 0
        %445 = vmatpush1.bf16.msra.mxu0 0
        %446 = vmatprep.subr.bf16.mxu0 0
        %447 = vmatpush1.bf16.msra.mxu0 0
        %448 = vmatprep.subr.bf16.mxu0 0
        %449 = vmatpush1.bf16.msra.mxu0 0
        %450 = vmatprep.subr.bf16.mxu0 0
        %451 = vmatpush1.bf16.msra.mxu0 0
        %452 = vmatprep.subr.bf16.mxu0 0
        %453 = vmatpush1.bf16.msra.mxu0 0
        %454 = vmatprep.subr.bf16.mxu0 0
        %455 = vmatpush1.bf16.msra.mxu0 0
        %456 = vmatprep.subr.bf16.mxu0 0
        %457 = vmatpush1.bf16.msra.mxu0 0
        %458 = vmatprep.subr.bf16.mxu0 0
        %459 = vmatpush1.bf16.msra.mxu0 0
        %460 = vmatprep.subr.bf16.mxu0 0
        %461 = vmatpush1.bf16.msra.mxu0 0
        %462 = vmatprep.subr.bf16.mxu0 0
        %463 = vmatpush1.bf16.msra.mxu0 0
        %464 = vmatprep.mubr.bf16.mxu0 0
        %465 = vmatmul.mubr.bf16.gmra.mrb[0].mxu0 %v430
        %v466 = vpop.f32.mrb[0].mxu0
        %v467 = vadd.f32 0.0, %v466
        %v468 = vpop.f32.mrb[0].mxu0
        %v469 = vadd.f32 0.0, %v468
        %v470 = vpop.f32.mrb[0].mxu0
        %v471 = vpop.f32.mrb[0].mxu0
        %472 = vdwg.mxu0
        %v473 = vmul.f32 %v467, %v385
        %v474 = vmul.f32 %v469, %v386
        %v475 = vmax.f32 %v473, -1.0
        %v476 = vmax.f32 %v474, -1.0
        %v477 = vmin.f32 %v475, 1.0
        %v478 = vmin.f32 %v476, 1.0
        %s479 = sld [smem:[#allocation2]]
        %v480 = vld [vmem:[%s4] sm:$0xff]
        %482 = vset.pattern.permute.xlu0 0
        %483 = vperm.xlu0 %482, %v480
        %v484 = vpop.permute.xlu0 %483
        %vm486 = vcmp.gt.f32.partialorder %v477, %v484
        %vm487 = vcmp.gt.f32.partialorder %v478, %v484
        %v488 = vstv %s479
        %v489 = vadd.f32 %v488, %v477
        %v490 = vadd.f32 %v488, %v478
        %v491 = vmul.f32 %v477, %v489
        %v492 = vmul.f32 %v478, %v490
        %v493 = vsel %vm486, %v491, %v477
        %v494 = vsel %vm487, %v492, %v478
        %v495 = vld [vmem:[%s0] sm:$0xff]
        %s496 = smul.u32 %s21, 256
        %v497 = vstv %s496
        %v498 = vsub.s32 %v495, %v497
        %v499 = vlaneseq
        %v500 = vand.u32 %v499, 127
        %v501 = vadd.s32 %v500, 128
        %502 = vset.pattern.permute.xlu0 0
        %503 = vperm.xlu0 %502, %v498
        %v504 = vpop.permute.xlu0 %503
        %vm505 = vcmp.eq.s32.totalorder %v500, %v504
        %vm506 = vcmp.eq.s32.totalorder %v501, %v504
        %v507 = vld [vmem:[%s5] sm:$0xff]
        %509 = vset.pattern.permute.xlu0 0
        %510 = vperm.xlu0 %509, %v507
        %v511 = vpop.permute.xlu0 %510
        %v513 = vsel %vm505, %v511, %v493
        %v514 = vsel %vm506, %v511, %v494
        %v515 = vmul.f32 %v513, 64.0
        %v516 = vmul.f32 %v514, 64.0
        %517 = vst [vmem:[%s313] sm:$0xff] %v515
        %518 = vst [vmem:[%s313 + $0x8] sm:$0xff] %v516
        %s519 = sand.u32 %s160, 1
        %s520 = scalar_lea.sflag [#allocation5], %s519
        %s521 = sand.u32 %s160, 1
        %s522 = smul.addr %s521, 16
        %s523 = scalar_lea.vmem [#allocation4], %s522
        // Predicated region
        $region83: #{_forward_impl.3} parent=77 // pred_check
          %p524 = pneg %p170
        $region84: #{_forward_impl.3} parent=77 // pred_check_branch
          %526 = sbr.rel (%p524) target = $region86
        $region85: #{_forward_impl.3} parent=77 // pred_region
          %s527 = smul.u32 2, %s21
          %s529 = ssub.s32 256, 256
          %530 = vsyncadd %s520, %s529
          %s531 = smul.addr %s527, 128
          %s532 = scalar_lea.hbm %s6, %s531
          %s534 = sshll.u32 %s523, 4
          %s535 = int_to_ptr.vmem [resolvable:$true] %s534
          %537 = dma.vmem_to_hbm [thread:$0]  %s535, 256, %s532, %s520
        $region86: #{_forward_impl.3} parent=77 // pred_fallthru
          _
      $region78: #{_forward_impl.3} parent=5 // pred_fallthru
        _
      %p538 = scmp.le.s32.totalorder 2, %s16
      // Predicated region
      $region87: #{_forward_impl.3} parent=5 // pred_check
        %p539 = pneg %p538
      $region88: #{_forward_impl.3} parent=5 // pred_check_branch
        %541 = sbr.rel (%p539) target = $region90
      $region89: #{_forward_impl.3} parent=5 // pred_region
        %s542 = ssub.s32 %s16, 2
        // Predicated region
        $region91: #{_forward_impl.3} parent=89 // pred_check
          %p543 = pneg %p176
        $region92: #{_forward_impl.3} parent=89 // pred_check_branch
          %545 = sbr.rel (%p543) target = $region94
        $region93: #{_forward_impl.3} parent=89 // pred_region
          %s546 = sand.u32 %s161, 1
          %s547 = scalar_lea.sflag [#allocation5], %s546
          %s548 = sand.u32 %s161, 1
          %s549 = smul.addr %s548, 16
          %s550 = scalar_lea.vmem [#allocation4], %s549
          %551 = dma.done %s547, 256
        $region94: #{_forward_impl.3} parent=89 // pred_fallthru
          _
      $region90: #{_forward_impl.3} parent=5 // pred_fallthru
        _
    $region6: #{_forward_impl.3} parent=1 // loop_footer
      %s20 = sadd.s32 1, %s16
    $region7: #{_forward_impl.3} parent=1 // loop_footer_branch
      %15 = sbr.rel target = $region3
    $region8: #{_forward_impl.3} parent=1 // loop_exit
      _
    %552 = vsyncpa [#allocation5], 1
    %s553 = scalar_lea.sflag [#allocation5], 1
    %554 = vsyncpa %s553, 1

</llo_original>
